<compile_context>
chip_gen: v7x
topology: tpu7x:2x2x1
jax: 0.10.0
libtpu: 0.0.40
codegen_flags: <defaults>
</compile_context>

<pallas_src>
import jax
import jax.numpy as jnp
from jax.experimental import pallas as pl
from jax.experimental.pallas import tpu as pltpu


def _main_classifier_kernel(x_ref, w_ref, b_ref, o_ref):
    # x_ref: (tn, tc, HW)   w_ref: (tc, P) bf16   b_ref: (1, P) f32
    # o_ref: (tn, P) f32 — its block index is constant across the channel
    # (reduction) grid axis, so it stays resident in VMEM and doubles as the
    # accumulator (no extra scratch).
    cj = pl.program_id(1)

    @pl.when(cj == 0)
    def _():
        o_ref[...] = jnp.zeros_like(o_ref)

    # Spatial sum-pool over the lane axis; the 1/(H*W) mean scale is pre-folded
    # into the weight. Accumulate in f32 regardless of the activation dtype
    # (bf16-safe, v5e-safe).
    pooled = jnp.sum(x_ref[...].astype(jnp.float32), axis=-1)          # (tn, tc)
    o_ref[...] += jnp.dot(pooled, w_ref[...].astype(jnp.float32),
                          preferred_element_type=jnp.float32)          # (tn, P)

    @pl.when(cj == pl.num_programs(1) - 1)
    def _():
        o_ref[...] += b_ref[...]


def _round_up(v, m):
    return ((v + m - 1) // m) * m


def _sublane_unit(itemsize):
    # Native second-to-last-dim tile per element width (f32: 8, bf16: 16, int8/fp8: 32).
    return {4: 8, 2: 16, 1: 32}.get(itemsize, 8)


def _vmem_sizes():
    """(tiling budget, hard cap for vmem_limit_bytes), per TPU generation."""
    try:
        physical = int(pltpu.get_tpu_info().vmem_capacity_bytes)
    except Exception:
        physical = 64 * 1024 * 1024        # conservative (v7x-sized) fallback
    return int(physical * 0.70), int(physical * 0.90)


def _pick_tn(n, cap=256):
    """Batch tile: multiple of 8 (output-block sublane) or the full batch.

    When the batch is large enough, force >= 2 blocks so the 'parallel' batch
    axis can shard across v7x's two TensorCores.
    """
    if n < 16:
        return n                            # cannot make two multiple-of-8 tiles
    cands = [d for d in range(8, n // 2 + 1, 8) if n % d == 0]
    if not cands:
        return n                            # no friendly divisor; full batch
    fitting = [d for d in cands if d <= cap]
    return max(fitting) if fitting else min(cands)


def _pick_tc(c, tn, hw, x_itemsize, padded_classes, budget, x_target, x_buffers):
    """Channel (reduction) tile: divisor of C, bf16/x-layout friendly, sized so the
    whole working set (lane/sublane-padded) fits the per-generation VMEM budget."""
    sub_x = _sublane_unit(x_itemsize)
    c_unit = max(sub_x, 16)                 # weight tile is bf16 (sublane unit 16)
    hw_pad = _round_up(hw, 128)             # lane padding of the pooled axis in VMEM

    def x_block_bytes(tc):
        return tn * _round_up(tc, sub_x) * hw_pad * x_itemsize

    def total_bytes(tc):
        x_b = x_block_bytes(tc) * x_buffers
        w_b = _round_up(tc, 16) * padded_classes * 2 * 2       # bf16 weight, double-buffered
        b_b = 8 * padded_classes * 4 * 2                       # f32 bias row, sublane-padded
        o_b = _round_up(tn, 8) * padded_classes * 4 * 2        # resident f32 output block
        return x_b + w_b + b_b + o_b

    cands = [d for d in range(c_unit, c + 1, c_unit) if c % d == 0]
    if not cands:
        cands = [d for d in range(8, c + 1, 8) if c % d == 0]
    if not cands:
        cands = [c]

    best = None
    for d in sorted(cands, reverse=True):
        if x_block_bytes(d) <= x_target and total_bytes(d) <= budget:
            best = d
            break
    if best is None:
        fitting = [d for d in cands if total_bytes(d) <= budget]
        best = max(fitting) if fitting else min(cands)
    return best, total_bytes(best)


def main_classifier_forward(x_nchw, weight, bias, *, weight_store_dtype=jnp.bfloat16):
    """Equivalent to: AdaptiveAvgPool2d(1) -> flatten -> Linear(channel, num_classes).

    x_nchw: (N, C, H, W); weight: (num_classes, C); bias: (num_classes,).
    Returns (N, num_classes) float32 logits.
    """
    n, c, h, w = x_nchw.shape
    num_classes = weight.shape[0]
    hw = h * w
    x_itemsize = jnp.dtype(x_nchw.dtype).itemsize

    # (N, C, H, W) -> (N, C, H*W): pure reshape of contiguous dims, no HBM transpose pass.
    x_kernel = x_nchw.reshape(n, c, hw)

    # Lane-dense classifier dimension: pad to a multiple of 128, slice after the call.
    padded_classes = _round_up(num_classes, 128)

    # Pre-transpose the weight and fold the 1/(H*W) mean scale into it:
    #   sum_pool(x) @ (W^T / HW) + b == mean_pool(x) @ W^T + b
    # Stored as bf16: half the HBM traffic / VMEM; the MXU still accumulates in f32.
    w_t = jnp.transpose(weight, (1, 0)).astype(jnp.float32) / jnp.float32(hw)
    w_t = jnp.pad(w_t, ((0, 0), (0, padded_classes - num_classes)))
    w_t = w_t.astype(weight_store_dtype)
    b2 = jnp.pad(bias.astype(jnp.float32),
                 (0, padded_classes - num_classes)).reshape(1, padded_classes)

    # Per-generation VMEM budget and x-block target (~4-8 MiB per block).
    budget, hard_cap = _vmem_sizes()
    x_target = min(8 * 1024 * 1024, max(2 * 1024 * 1024, budget // 8))
    x_buffers = 3                       # pl.Buffered(3) on x (accounted even if unused)

    tn = _pick_tn(n)
    tc, tile_bytes = _pick_tc(c, tn, hw, x_itemsize, padded_classes,
                              budget, x_target, x_buffers)
    grid = (n // tn, c // tc)

    vmem_limit = int(min(hard_cap, max(32 * 1024 * 1024, int(tile_bytes * 1.25))))

    x_index_map = lambda i, j: (i, j, 0)
    x_spec = pl.BlockSpec((tn, tc, hw), x_index_map)
    if grid[0] * grid[1] >= 3:
        try:
            x_spec = pl.BlockSpec((tn, tc, hw), x_index_map,
                                  pipeline_mode=pl.Buffered(3))
        except TypeError:
            pass                        # older BlockSpec signature: keep default 2-deep

    out = pl.pallas_call(
        _main_classifier_kernel,
        out_shape=jax.ShapeDtypeStruct((n, padded_classes), jnp.float32),
        grid=grid,
        in_specs=[
            x_spec,
            pl.BlockSpec((tc, padded_classes), lambda i, j: (j, 0)),
            pl.BlockSpec((1, padded_classes), lambda i, j: (0, 0)),
        ],
        out_specs=pl.BlockSpec((tn, padded_classes), lambda i, j: (i, 0)),
        compiler_params=pltpu.CompilerParams(
            dimension_semantics=("parallel", "arbitrary"),
            vmem_limit_bytes=vmem_limit,
        ),
    )(x_kernel, w_t, b2)

    return out[:, :num_classes]


if __name__ == "__main__":
    # Small shapes consistent with the module's forward.
    N, C, H, W = 2, 32, 8, 8
    NUM_CLASSES = 100

    key = jax.random.PRNGKey(0)
    kx, kw, kb = jax.random.split(key, 3)

    x = jax.random.normal(kx, (N, C, H, W), dtype=jnp.float32)

    # Deterministic nn.Linear-style init: U(-1/sqrt(C), 1/sqrt(C)).
    bound = 1.0 / jnp.sqrt(jnp.float32(C))
    weight = jax.random.uniform(kw, (NUM_CLASSES, C), dtype=jnp.float32,
                                minval=-bound, maxval=bound)
    bias = jax.random.uniform(kb, (NUM_CLASSES,), dtype=jnp.float32,
                              minval=-bound, maxval=bound)

    out = main_classifier_forward(x, weight, bias)
    out = jax.block_until_ready(out)

    # Reference: PyTorch semantics of AdaptiveAvgPool2d(1) + Linear.
    ref = jnp.mean(x, axis=(2, 3)) @ weight.T + bias
    assert out.shape == (N, NUM_CLASSES), out.shape
    # Weight is stored in bf16 inside the kernel -> slightly loosened tolerance.
    assert jnp.allclose(out, ref, atol=1e-2, rtol=1e-2), \
        float(jnp.max(jnp.abs(out - ref)))

    print("KERNEL_OK")
</pallas_src>

<mosaic_0001>
module attributes {stable_mosaic.version = 11 : i64} {
  func.func @_main_classifier_kernel(%arg0: i32, %arg1: i32, %arg2: memref<2x32x64xf32, #tpu.memory_space<vmem>>, %arg3: memref<32x128xbf16, #tpu.memory_space<vmem>>, %arg4: memref<1x128xf32, #tpu.memory_space<vmem>>, %arg5: memref<2x128xf32, #tpu.memory_space<vmem>>) attributes {dimension_semantics = [#tpu.dimension_semantics<parallel>, #tpu.dimension_semantics<arbitrary>], iteration_bounds = array<i64: 1, 1>, scalar_prefetch = 0 : i64, scratch_operands = 0 : i64, tpu.core_type = #tpu.core_type<tc>, window_params = [{transform_indices = @transform_0, window_bounds = array<i64: 2, 32, 64>}, {transform_indices = @transform_1, window_bounds = array<i64: 32, 128>}, {pipeline_mode = #tpu.pipeline_mode<synchronous>, transform_indices = @transform_2, window_bounds = array<i64: 1, 128>}, {transform_indices = @transform_3, window_bounds = array<i64: 2, 128>}]} {
    %c0_i32 = arith.constant 0 : i32
    %0 = arith.cmpi eq, %arg1, %c0_i32 : i32
    %1 = arith.extui %0 : i1 to i32
    %c0_i32_0 = arith.constant 0 : i32
    %2 = arith.cmpi ne, %1, %c0_i32_0 : i32
    scf.if %2 {
      %cst_12 = arith.constant 0.000000e+00 : f32
      %14 = vector.broadcast %cst_12 : f32 to vector<2x128xf32>
      %c0_13 = arith.constant 0 : index
      %c0_14 = arith.constant 0 : index
      %15 = vector.load %arg5[%c0_13, %c0_14] : memref<2x128xf32, #tpu.memory_space<vmem>>, vector<2x128xf32>
      tpu.vector_store %arg5[%c0_13, %c0_14], %14 {strides = array<i32>} : memref<2x128xf32, #tpu.memory_space<vmem>>, vector<2x128xf32>,
    } else {
    }
    %c0 = arith.constant 0 : index
    %c0_1 = arith.constant 0 : index
    %c0_2 = arith.constant 0 : index
    %3 = vector.load %arg2[%c0, %c0_1, %c0_2] : memref<2x32x64xf32, #tpu.memory_space<vmem>>, vector<2x32x64xf32>
    %cst = arith.constant dense<0.000000e+00> : vector<2x32xf32>
    %4 = vector.multi_reduction <add>, %3, %cst [2] : vector<2x32x64xf32> to vector<2x32xf32>
    %c0_3 = arith.constant 0 : index
    %c0_4 = arith.constant 0 : index
    %5 = vector.load %arg5[%c0_3, %c0_4] : memref<2x128xf32, #tpu.memory_space<vmem>>, vector<2x128xf32>
    %c0_5 = arith.constant 0 : index
    %c0_6 = arith.constant 0 : index
    %6 = vector.load %arg3[%c0_5, %c0_6] : memref<32x128xbf16, #tpu.memory_space<vmem>>, vector<32x128xbf16>
    %7 = arith.extf %6 : vector<32x128xbf16> to vector<32x128xf32>
    %cst_7 = arith.constant dense<0.000000e+00> : vector<2x128xf32>
    %8 = tpu.matmul %4, %7, %cst_7 {dimension_numbers = #tpu.dot_dimension_numbers<[1], [0], [0], [1], [0, 0, 1, 1], [], []>} : vector<2x32xf32>, vector<32x128xf32>, vector<2x128xf32> -> vector<2x128xf32>
    %9 = arith.addf %5, %8 : vector<2x128xf32>
    %c0_8 = arith.constant 0 : index
    %c0_9 = arith.constant 0 : index
    %10 = vector.load %arg5[%c0_8, %c0_9] : memref<2x128xf32, #tpu.memory_space<vmem>>, vector<2x128xf32>
    tpu.vector_store %arg5[%c0_8, %c0_9], %9 {strides = array<i32>} : memref<2x128xf32, #tpu.memory_space<vmem>>, vector<2x128xf32>,
    %c0_i32_10 = arith.constant 0 : i32
    %11 = arith.cmpi eq, %arg1, %c0_i32_10 : i32
    %12 = arith.extui %11 : i1 to i32
    %c0_i32_11 = arith.constant 0 : i32
    %13 = arith.cmpi ne, %12, %c0_i32_11 : i32
    scf.if %13 {
      %c0_12 = arith.constant 0 : index
      %c0_13 = arith.constant 0 : index
      %14 = vector.load %arg5[%c0_12, %c0_13] : memref<2x128xf32, #tpu.memory_space<vmem>>, vector<2x128xf32>
      %c0_14 = arith.constant 0 : index
      %c0_15 = arith.constant 0 : index
      %15 = vector.load %arg4[%c0_14, %c0_15] : memref<1x128xf32, #tpu.memory_space<vmem>>, vector<1x128xf32>
      %16 = vector.broadcast %15 : vector<1x128xf32> to vector<2x128xf32>
      %17 = arith.addf %14, %16 : vector<2x128xf32>
      %c0_16 = arith.constant 0 : index
      %c0_17 = arith.constant 0 : index
      %18 = vector.load %arg5[%c0_16, %c0_17] : memref<2x128xf32, #tpu.memory_space<vmem>>, vector<2x128xf32>
      tpu.vector_store %arg5[%c0_16, %c0_17], %17 {strides = array<i32>} : memref<2x128xf32, #tpu.memory_space<vmem>>, vector<2x128xf32>,
    } else {
    }
    return
  }
  func.func @transform_0(%arg0: i32, %arg1: i32) -> (i32, i32, i32) {
    %c0_i32 = arith.constant 0 : i32
    %c0_i32_0 = arith.constant 0 : i32
    return %arg0, %arg1, %c0_i32 : i32, i32, i32
  }
  func.func @transform_1(%arg0: i32, %arg1: i32) -> (i32, i32) {
    %c0_i32 = arith.constant 0 : i32
    %c0_i32_0 = arith.constant 0 : i32
    return %arg1, %c0_i32 : i32, i32
  }
  func.func @transform_2(%arg0: i32, %arg1: i32) -> (i32, i32) {
    %c0_i32 = arith.constant 0 : i32
    %c0_i32_0 = arith.constant 0 : i32
    %c0_i32_1 = arith.constant 0 : i32
    return %c0_i32, %c0_i32_0 : i32, i32
  }
  func.func @transform_3(%arg0: i32, %arg1: i32) -> (i32, i32) {
    %c0_i32 = arith.constant 0 : i32
    %c0_i32_0 = arith.constant 0 : i32
    return %arg0, %c0_i32 : i32, i32
  }
}

</mosaic_0001>

<llo_original>
// kernel: tpu_custom_call.1
$region0: #{tpu_custom_call.1}
  #allocation0 [shape = 'u32[]', space=smem, size = 0x4, offset = 0x4, fixed_abs, tag = 'smem constant byte address 0x4 - core index']
  #allocation1 [shape = 'u32[144,128]{1,0:T(1,128)}', space=vmem, size = 0x12000, scoped, tag = 'internal scratch']
  %s0 = inlined_call_operand.hbm [shape: f32[2,32,64], index: 0, kind: input, shape index: {}]
  %s1 = inlined_call_operand.hbm [shape: bf16[32,128], index: 1, kind: input, shape index: {}]
  %s2 = inlined_call_operand.vmem [shape: f32[1,128], index: 2, kind: input, shape index: {}]
  %s3 = inlined_call_operand.hbm [shape: f32[2,128], index: 3, kind: output, shape index: {}]
  %s4 = sld [smem:[#allocation0]]
  $region38: #{tpu_custom_call.1} parent=0
    _
  %s6 = ssub.s32 1, %s4
  %s7 = scalar_select 0, %s6, %s4
  $region1: #{tpu_custom_call.1} parent=0
    #allocation2 [shape = 'u8[32768]{0}', space=vmem, size = 0x8000, scoped, tag = 'input window, operand 0, single buffered']
    #allocation3 [shape = 's32[1]{0}', space=sflag, size = 0x4, scoped, tag = 'scoped memory for tpu_custom_call.1']
    #allocation4 [shape = 's32[1]{0}', space=sflag, size = 0x4, scoped, tag = 'scoped memory for tpu_custom_call.1']
    #allocation5 [shape = 'u8[8192]{0}', space=vmem, size = 0x2000, scoped, tag = 'input window, operand 1, single buffered']
    #allocation6 [shape = 's32[1]{0}', space=sflag, size = 0x4, scoped, tag = 'scoped memory for tpu_custom_call.1']
    #allocation7 [shape = 'u8[1024]{0}', space=vmem, size = 0x400, scoped, tag = 'output window, operand 0, single buffered']
    %8 = vsyncpa [#allocation3], 0
    %9 = vsyncpa [#allocation6], 0
    %10 = vsyncpa [#allocation4], 0
    // Predicated region
    $region2: #{tpu_custom_call.1} parent=1 // pred_check
      _
    $region3: #{tpu_custom_call.1} parent=1 // pred_check_branch
      %12 = sbr.rel (0) target = $region5
    $region4: #{tpu_custom_call.1} parent=1 // pred_region
      %s14 = ssub.s32 1024, 1024
      %15 = vsyncadd [#allocation3], %s14
      %s16 = sshll.u32 [#allocation2], 4
      %s17 = int_to_ptr.vmem [resolvable:$true] %s16
      %22 = dma.hbm_to_vmem [thread:$0]  %s0, 1024, %s17, [#allocation3], 128, 128, 8
    $region5: #{tpu_custom_call.1} parent=1 // pred_fallthru
      _
    // Predicated region
    $region6: #{tpu_custom_call.1} parent=1 // pred_check
      _
    $region7: #{tpu_custom_call.1} parent=1 // pred_check_branch
      %24 = sbr.rel (0) target = $region9
    $region8: #{tpu_custom_call.1} parent=1 // pred_region
      %s26 = ssub.s32 256, 256
      %27 = vsyncadd [#allocation6], %s26
      %s28 = sshll.u32 [#allocation5], 4
      %s29 = int_to_ptr.vmem [resolvable:$true] %s28
      %34 = dma.hbm_to_vmem [thread:$0]  %s1, 256, %s29, [#allocation6], 64, 64, 4
    $region9: #{tpu_custom_call.1} parent=1 // pred_fallthru
      _
    // Predicated region
    $region10: #{tpu_custom_call.1} parent=1 // pred_check
      _
    $region11: #{tpu_custom_call.1} parent=1 // pred_check_branch
      %36 = sbr.rel (0) target = $region13
    $region12: #{tpu_custom_call.1} parent=1 // pred_region
      _
    $region13: #{tpu_custom_call.1} parent=1 // pred_fallthru
      _
    // Predicated region
    $region14: #{tpu_custom_call.1} parent=1 // pred_check
      _
    $region15: #{tpu_custom_call.1} parent=1 // pred_check_branch
      %38 = sbr.rel (0) target = $region17
    $region16: #{tpu_custom_call.1} parent=1 // pred_region
      %39 = dma.done [#allocation3], 1024
    $region17: #{tpu_custom_call.1} parent=1 // pred_fallthru
      _
    // Predicated region
    $region18: #{tpu_custom_call.1} parent=1 // pred_check
      _
    $region19: #{tpu_custom_call.1} parent=1 // pred_check_branch
      %41 = sbr.rel (0) target = $region21
    $region20: #{tpu_custom_call.1} parent=1 // pred_region
      %42 = dma.done [#allocation6], 256
    $region21: #{tpu_custom_call.1} parent=1 // pred_fallthru
      _
    %p43 = scmp.eq.s32.totalorder 0, 0
    // Predicated region
    $region22: #{tpu_custom_call.1} parent=1 // pred_check
      %p44 = pneg %p43
    $region23: #{tpu_custom_call.1} parent=1 // pred_check_branch
      %46 = sbr.rel (%p44) target = $region25
    $region24: #{tpu_custom_call.1} parent=1 // pred_region
      %47 = vst [vmem:[#allocation7] sm:$0x3] 0.0
    $region25: #{tpu_custom_call.1} parent=1 // pred_fallthru
      _
    %v48 = vld [vmem:[#allocation2] sm:$0xff]
    %v49 = vld [vmem:[#allocation2 + $0x8] sm:$0xff]
    %v50 = vld [vmem:[#allocation2 + $0x10] sm:$0xff]
    %v51 = vld [vmem:[#allocation2 + $0x18] sm:$0xff]
    %v52 = vld [vmem:[#allocation2 + $0x20] sm:$0xff]
    %v53 = vld [vmem:[#allocation2 + $0x28] sm:$0xff]
    %v54 = vld [vmem:[#allocation2 + $0x30] sm:$0xff]
    %v55 = vld [vmem:[#allocation2 + $0x38] sm:$0xff]
    %vm56 = vcmask 523264
    %v57 = vsel %vm56, %v48, 0.0
    %58 = vadd.xlane.f32.xlu0 %v57
    %v59 = vpop.xlane.xlu0 %58
    %v60 = vsel %vm56, %v49, 0.0
    %61 = vadd.xlane.f32.xlu0 %v60
    %v62 = vpop.xlane.xlu0 %61
    %v63 = vsel %vm56, %v50, 0.0
    %64 = vadd.xlane.f32.xlu0 %v63
    %v65 = vpop.xlane.xlu0 %64
    %v66 = vsel %vm56, %v51, 0.0
    %67 = vadd.xlane.f32.xlu0 %v66
    %v68 = vpop.xlane.xlu0 %67
    %v69 = vsel %vm56, %v52, 0.0
    %70 = vadd.xlane.f32.xlu0 %v69
    %v71 = vpop.xlane.xlu0 %70
    %v72 = vsel %vm56, %v53, 0.0
    %73 = vadd.xlane.f32.xlu0 %v72
    %v74 = vpop.xlane.xlu0 %73
    %v75 = vsel %vm56, %v54, 0.0
    %76 = vadd.xlane.f32.xlu0 %v75
    %v77 = vpop.xlane.xlu0 %76
    %v78 = vsel %vm56, %v55, 0.0
    %79 = vadd.xlane.f32.xlu0 %v78
    %v80 = vpop.xlane.xlu0 %79
    %v81 = vld [vmem:[#allocation7] sm:$0x3]
    %v82 = vld [vmem:[#allocation5] sm:$0xf]
    %v83 = vld [vmem:[#allocation5 + $0x4] sm:$0xf]
    %v84 = vld [vmem:[#allocation5 + $0x8] sm:$0xf]
    %v85 = vld [vmem:[#allocation5 + $0xc] sm:$0xf]
    %v86 = vunpack.c.l.bf16 %v82
    %v87 = vunpack.c.l.bf16 %v83
    %v88 = vunpack.c.l.bf16 %v84
    %v89 = vunpack.c.l.bf16 %v85
    %v98 = vlaneseq
    %v99 = vand.u32 %v98, 127
    %v100 = vlaneseq
    %v101 = vshrl.u32 %v100, 7
    %v102 = vsub.s32 %v99, %v101
    %v103 = vrot.slane %v59, %v102
    %v104 = vadd.s32 %v99, 4294967288
    %v105 = vlaneseq
    %v106 = vshrl.u32 %v105, 7
    %v107 = vsub.s32 %v104, %v106
    %v108 = vrot.slane %v62, %v107
    %vm109 = vcmask 130112
    %v110 = vsel %vm109, %v108, %v103
    %v111 = vadd.s32 %v99, 4294967280
    %v112 = vlaneseq
    %v113 = vshrl.u32 %v112, 7
    %v114 = vsub.s32 %v111, %v113
    %v115 = vrot.slane %v65, %v114
    %vm116 = vcmask 195712
    %v117 = vsel %vm116, %v115, %v110
    %v118 = vadd.s32 %v99, 4294967272
    %v119 = vlaneseq
    %v120 = vshrl.u32 %v119, 7
    %v121 = vsub.s32 %v118, %v120
    %v122 = vrot.slane %v68, %v121
    %vm123 = vcmask 261312
    %v124 = vsel %vm123, %v122, %v117
    %v125 = vlaneseq
    %v126 = vshrl.u32 %v125, 7
    %v127 = vsub.s32 %v99, %v126
    %v128 = vrot.slane %v71, %v127
    %v129 = vlaneseq
    %v130 = vshrl.u32 %v129, 7
    %v131 = vsub.s32 %v104, %v130
    %v132 = vrot.slane %v74, %v131
    %v133 = vsel %vm109, %v132, %v128
    %v134 = vlaneseq
    %v135 = vshrl.u32 %v134, 7
    %v136 = vsub.s32 %v111, %v135
    %v137 = vrot.slane %v77, %v136
    %v138 = vsel %vm116, %v137, %v133
    %v139 = vlaneseq
    %v140 = vshrl.u32 %v139, 7
    %v141 = vsub.s32 %v118, %v140
    %v142 = vrot.slane %v80, %v141
    %v143 = vsel %vm123, %v142, %v138
    %vm144 = vcmask 1041409
    %v145 = vsel %vm144, %v143, %v124
    %vm146 = vcmask 261120
    %v147 = vsel %vm146, %v145, 0
    %149 = vmatprep.subr.mxu0 0.0
    %150 = vmatpush1.msra.mxu0 %v86
    %151 = vmatprep.subr.mxu0 0.0
    %152 = vmatpush1.msra.mxu0 %v87
    %153 = vmatprep.subr.mxu0 0.0
    %154 = vmatpush1.msra.mxu0 %v88
    %155 = vmatprep.subr.mxu0 0.0
    %156 = vmatpush1.msra.mxu0 %v89
    %157 = vmatprep.subr.mxu0 0.0
    %158 = vmatpush1.msra.mxu0 0.0
    %159 = vmatprep.subr.mxu0 0.0
    %160 = vmatpush1.msra.mxu0 0.0
    %161 = vmatprep.subr.mxu0 0.0
    %162 = vmatpush1.msra.mxu0 0.0
    %163 = vmatprep.subr.mxu0 0.0
    %164 = vmatpush1.msra.mxu0 0.0
    %165 = vmatprep.subr.mxu0 0.0
    %166 = vmatpush1.msra.mxu0 0.0
    %167 = vmatprep.subr.mxu0 0.0
    %168 = vmatpush1.msra.mxu0 0.0
    %169 = vmatprep.subr.mxu0 0.0
    %170 = vmatpush1.msra.mxu0 0.0
    %171 = vmatprep.subr.mxu0 0.0
    %172 = vmatpush1.msra.mxu0 0.0
    %173 = vmatprep.subr.mxu0 0.0
    %174 = vmatpush1.msra.mxu0 0.0
    %175 = vmatprep.subr.mxu0 0.0
    %176 = vmatpush1.msra.mxu0 0.0
    %177 = vmatprep.subr.mxu0 0.0
    %178 = vmatpush1.msra.mxu0 0.0
    %179 = vmatprep.subr.mxu0 0.0
    %180 = vmatpush1.msra.mxu0 0.0
    %181 = vmatprep.subr.mxu0 0.0
    %182 = vmatpush1.msra.mxu0 0.0
    %183 = vmatprep.subr.mxu0 0.0
    %184 = vmatpush1.msra.mxu0 0.0
    %185 = vmatprep.subr.mxu0 0.0
    %186 = vmatpush1.msra.mxu0 0.0
    %187 = vmatprep.subr.mxu0 0.0
    %188 = vmatpush1.msra.mxu0 0.0
    %189 = vmatprep.subr.mxu0 0.0
    %190 = vmatpush1.msra.mxu0 0.0
    %191 = vmatprep.subr.mxu0 0.0
    %192 = vmatpush1.msra.mxu0 0.0
    %193 = vmatprep.subr.mxu0 0.0
    %194 = vmatpush1.msra.mxu0 0.0
    %195 = vmatprep.subr.mxu0 0.0
    %196 = vmatpush1.msra.mxu0 0.0
    %197 = vmatprep.subr.mxu0 0.0
    %198 = vmatpush1.msra.mxu0 0.0
    %199 = vmatprep.subr.mxu0 0.0
    %200 = vmatpush1.msra.mxu0 0.0
    %201 = vmatprep.subr.mxu0 0.0
    %202 = vmatpush1.msra.mxu0 0.0
    %203 = vmatprep.subr.mxu0 0.0
    %204 = vmatpush1.msra.mxu0 0.0
    %205 = vmatprep.subr.mxu0 0.0
    %206 = vmatpush1.msra.mxu0 0.0
    %207 = vmatprep.subr.mxu0 0.0
    %208 = vmatpush1.msra.mxu0 0.0
    %209 = vmatprep.subr.mxu0 0.0
    %210 = vmatpush1.msra.mxu0 0.0
    %211 = vmatprep.subr.mxu0 0.0
    %212 = vmatpush1.msra.mxu0 0.0
    %213 = vmatprep.mubr.f32.mxu0 0.0
    %214 = vmatmul.mubr.f32.gmra.mrb[0].mxu0 %v147
    %v215 = vpop.f32.mrb[0].mxu0
    %v216 = vadd.f32 0.0, %v215
    %v217 = vpop.f32.mrb[0].mxu0
    %218 = vdwg.mxu0
    %v219 = vadd.f32 %v81, %v216
    %220 = vst [vmem:[#allocation7] sm:$0x3] %v219
    // Predicated region
    $region26: #{tpu_custom_call.1} parent=1 // pred_check
      %p221 = pneg %p43
    $region27: #{tpu_custom_call.1} parent=1 // pred_check_branch
      %223 = sbr.rel (%p221) target = $region29
    $region28: #{tpu_custom_call.1} parent=1 // pred_region
      %v224 = vld [vmem:[#allocation7] sm:$0x3]
      %v225 = vld [vmem:[%s2] sm:$0x1]
      %v227 = vlaneseq
      %v228 = vshrl.u32 %v227, 7
      %v229 = vsub.s32 0, %v228
      %v230 = vrot.slane %v225, %v229
      %v232 = vadd.f32 %v224, %v230
      %233 = vst [vmem:[#allocation7] sm:$0x3] %v232
    $region29: #{tpu_custom_call.1} parent=1 // pred_fallthru
      _
    // Predicated region
    $region30: #{tpu_custom_call.1} parent=1 // pred_check
      _
    $region31: #{tpu_custom_call.1} parent=1 // pred_check_branch
      %235 = sbr.rel (0) target = $region33
    $region32: #{tpu_custom_call.1} parent=1 // pred_region
      %s237 = ssub.s32 32, 32
      %238 = vsyncadd [#allocation4], %s237
      %s240 = sshll.u32 [#allocation7], 4
      %s241 = int_to_ptr.vmem [resolvable:$true] %s240
      %243 = dma.vmem_to_hbm [thread:$0]  %s241, 32, %s3, [#allocation4]
    $region33: #{tpu_custom_call.1} parent=1 // pred_fallthru
      _
    // Predicated region
    $region34: #{tpu_custom_call.1} parent=1 // pred_check
      _
    $region35: #{tpu_custom_call.1} parent=1 // pred_check_branch
      %245 = sbr.rel (0) target = $region37
    $region36: #{tpu_custom_call.1} parent=1 // pred_region
      %246 = dma.done [#allocation4], 32
    $region37: #{tpu_custom_call.1} parent=1 // pred_fallthru
      _
    %247 = vsyncpa [#allocation3], 1
    %248 = vsyncpa [#allocation6], 1
    %249 = vsyncpa [#allocation4], 1

</llo_original>
